<compile_context>
chip_gen: v7x
topology: tpu7x:2x2x1
jax: 0.10.0
libtpu: 0.0.40
codegen_flags: <defaults>
</compile_context>

<pallas_src>
import jax
import jax.numpy as jnp
from jax.experimental import pallas as pl
from jax.experimental.pallas import tpu as pltpu


def role_predictor_kernel(x_ref, l1_ref, l2_ref, o_ref):
    """Single invocation, both roles fused.

    x_ref : (B, D)        input embeddings (f32)
    l1_ref: (D+pad, 2D)   rows 0:D   = [W1_agent | W1_theme], row D = [b1_a|b1_t]
    l2_ref: (2D+pad, 2V)  rows 0:2D  = block-diag [[W2_a,0],[0,W2_t]], row 2D = [b2_a|b2_t]
    o_ref : (2, B, V)     log-softmax outputs (0 = agent, 1 = theme)
    """
    B, D = x_ref.shape
    D2 = l1_ref.shape[1]          # 2*D
    V = o_ref.shape[2]

    x = x_ref[...]                                    # (B, D)
    w1 = l1_ref[:D, :]                                # (D, 2D)
    b1 = l1_ref[D:D + 1, :]                           # (1, 2D)
    w2 = l2_ref[:D2, :]                               # (2D, 2V) block-diagonal
    b2 = l2_ref[D2:D2 + 1, :]                         # (1, 2V)

    # Layer 1, both roles in one MXU matmul.
    h = jnp.dot(x, w1, preferred_element_type=jnp.float32) + b1
    h = jnp.maximum(h, 0.1 * h)                       # leaky_relu, slope 0.1

    # Layer 2, both roles in one MXU matmul (block-diagonal weights), giving
    # lane-dense (B, 2V) logits: lanes [0:V] = agent, [V:2V] = theme.
    logits = jnp.dot(h, w2, preferred_element_type=jnp.float32) + b2

    # Role-major (2B, V): both lane halves are exactly one 128-lane vreg block,
    # so this concat is a relabel, not a cross-lane shuffle.  One log-softmax
    # pass then covers both roles; the final reshape to (2, B, V) keeps the
    # (8,128) tiles intact, and the store is a single contiguous unmasked vst.
    z = jnp.concatenate([logits[:, :V], logits[:, V:]], axis=0)   # (2B, V)
    m = jnp.max(z, axis=-1, keepdims=True)
    z = z - m
    z = z - jnp.log(jnp.sum(jnp.exp(z), axis=-1, keepdims=True))

    o_ref[...] = z.reshape(2, B, V).astype(o_ref.dtype)


def pack_params(params):
    """ONE-TIME packing of role-stacked params into the two kernel operands.

    params (role-stacked, index 0 = agent, 1 = theme, (d_in, d_out) layout):
      w1: (2, D, D), b1: (2, D), w2: (2, D, V), b2: (2, V)
    Returns {"l1": (D+pad, 2D), "l2": (2D+pad, 2V)}.
    Call this once at model-setup time, NOT per forward pass.
    """
    w1, b1, w2, b2 = params["w1"], params["b1"], params["w2"], params["b2"]
    D = w1.shape[-1]
    V = w2.shape[-1]

    def pad_rows(a):  # pad sublane dim to a multiple of 8 for clean tiling
        return jnp.pad(a, ((0, (-a.shape[0]) % 8), (0, 0)))

    # Layer 1: [W1_agent | W1_theme] packed along the output dim, bias as an
    # extra row (keeps the input count down: one DMA per layer).
    l1 = jnp.concatenate(
        [
            jnp.concatenate([w1[0], w1[1]], axis=1),                 # (D, 2D)
            jnp.concatenate([b1[0], b1[1]], axis=0)[None, :],        # (1, 2D)
        ],
        axis=0,
    )

    # Layer 2: block-diagonal so a single matmul produces both roles' logits.
    zero = jnp.zeros((D, V), w2.dtype)
    w2bd = jnp.concatenate(
        [
            jnp.concatenate([w2[0], zero], axis=1),
            jnp.concatenate([zero, w2[1]], axis=1),
        ],
        axis=0,
    )                                                                # (2D, 2V)
    l2 = jnp.concatenate(
        [w2bd, jnp.concatenate([b2[0], b2[1]], axis=0)[None, :]], axis=0
    )

    return {"l1": pad_rows(l1), "l2": pad_rows(l2)}


def role_predictor(inp, packed):
    """Forward pass. `packed` must come from pack_params() (pre-packed once)."""
    B, D = inp.shape
    l1, l2 = packed["l1"], packed["l2"]
    V = l2.shape[1] // 2

    # Tiny problem: no grid, whole operands VMEM-resident (fits easily even in
    # v7x's 64 MiB/TC), single TensorCore.
    vmem = pl.BlockSpec(memory_space=pltpu.MemorySpace.VMEM)

    out = pl.pallas_call(
        role_predictor_kernel,
        out_shape=jax.ShapeDtypeStruct((2, B, V), jnp.float32),
        in_specs=[vmem, vmem, vmem],
        out_specs=vmem,
        cost_estimate=pl.CostEstimate(
            flops=2 * B * D * (2 * D) + 2 * B * (2 * D) * (2 * V),
            transcendentals=2 * B * (V + 1),
            bytes_accessed=4 * (inp.size + l1.size + l2.size + 2 * B * V),
        ),
    )(inp, l1, l2)

    return {"agent": out[0], "theme": out[1]}


def init_params(key, d_emb, vocab_size):
    """Deterministic init mimicking torch.nn.Linear (U[-1/sqrt(fan_in), +])."""
    ks = jax.random.split(key, 8)
    lim = 1.0 / jnp.sqrt(d_emb)

    def u(k, shape):
        return jax.random.uniform(k, shape, jnp.float32, -lim, lim)

    # Stacked along role axis: index 0 = agent, 1 = theme. (d_in, d_out) layout.
    w1 = jnp.stack([u(ks[0], (d_emb, d_emb)), u(ks[1], (d_emb, d_emb))])
    b1 = jnp.stack([u(ks[2], (d_emb,)), u(ks[3], (d_emb,))])
    w2 = jnp.stack([u(ks[4], (d_emb, vocab_size)), u(ks[5], (d_emb, vocab_size))])
    b2 = jnp.stack([u(ks[6], (vocab_size,)), u(ks[7], (vocab_size,))])
    return {"w1": w1, "b1": b1, "w2": w2, "b2": b2}


def role_predictor_ref(inp, params):
    """Pure-JAX reference mirroring the PyTorch forward."""
    outs = {}
    for idx, name in enumerate(("agent", "theme")):
        h = inp @ params["w1"][idx] + params["b1"][idx]
        h = jnp.where(h >= 0, h, 0.1 * h)
        logits = h @ params["w2"][idx] + params["b2"][idx]
        outs[name] = jax.nn.log_softmax(logits, axis=-1)
    return outs


if __name__ == "__main__":
    B, D_EMB, VOCAB = 8, 32, 128

    key = jax.random.PRNGKey(0)
    k_x, k_p = jax.random.split(key)
    x = jax.random.normal(k_x, (B, D_EMB), dtype=jnp.float32)
    params = init_params(k_p, D_EMB, VOCAB)

    # One-time packing (setup cost, not part of the per-call forward path).
    packed = pack_params(params)
    jax.block_until_ready(packed)

    out = role_predictor(x, packed)
    jax.block_until_ready(out)

    ref = role_predictor_ref(x, params)
    for name in ("agent", "theme"):
        assert out[name].shape == (B, VOCAB)
        err = jnp.max(jnp.abs(out[name] - ref[name]))
        assert err < 1e-4, f"{name} mismatch: {err}"

    print("KERNEL_OK")
</pallas_src>

<mosaic_0001>
module attributes {stable_mosaic.version = 11 : i64} {
  func.func @role_predictor_kernel(%arg0: memref<8x32xf32, #tpu.memory_space<vmem>>, %arg1: memref<40x64xf32, #tpu.memory_space<vmem>>, %arg2: memref<72x256xf32, #tpu.memory_space<vmem>>, %arg3: memref<2x8x128xf32, #tpu.memory_space<vmem>>) attributes {dimension_semantics = [], scalar_prefetch = 0 : i64, scratch_operands = 0 : i64, tpu.core_type = #tpu.core_type<tc>} {
    %c0 = arith.constant 0 : index
    %c0_0 = arith.constant 0 : index
    %0 = vector.load %arg0[%c0, %c0_0] : memref<8x32xf32, #tpu.memory_space<vmem>>, vector<8x32xf32>
    %c0_1 = arith.constant 0 : index
    %c0_2 = arith.constant 0 : index
    %1 = vector.load %arg1[%c0_1, %c0_2] : memref<40x64xf32, #tpu.memory_space<vmem>>, vector<32x64xf32>
    %c32 = arith.constant 32 : index
    %c0_3 = arith.constant 0 : index
    %2 = vector.load %arg1[%c32, %c0_3] : memref<40x64xf32, #tpu.memory_space<vmem>>, vector<1x64xf32>
    %c0_4 = arith.constant 0 : index
    %c0_5 = arith.constant 0 : index
    %3 = vector.load %arg2[%c0_4, %c0_5] : memref<72x256xf32, #tpu.memory_space<vmem>>, vector<64x256xf32>
    %c64 = arith.constant 64 : index
    %c0_6 = arith.constant 0 : index
    %4 = vector.load %arg2[%c64, %c0_6] : memref<72x256xf32, #tpu.memory_space<vmem>>, vector<1x256xf32>
    %cst = arith.constant dense<0.000000e+00> : vector<8x64xf32>
    %5 = tpu.matmul %0, %1, %cst {dimension_numbers = #tpu.dot_dimension_numbers<[1], [0], [0], [1], [0, 0, 1, 1], [], []>} : vector<8x32xf32>, vector<32x64xf32>, vector<8x64xf32> -> vector<8x64xf32>
    %6 = vector.broadcast %2 : vector<1x64xf32> to vector<8x64xf32>
    %7 = arith.addf %5, %6 : vector<8x64xf32>
    %cst_7 = arith.constant 1.000000e-01 : f32
    %8 = vector.broadcast %cst_7 : f32 to vector<8x64xf32>
    %9 = arith.mulf %8, %7 : vector<8x64xf32>
    %10 = arith.maximumf %7, %9 : vector<8x64xf32>
    %cst_8 = arith.constant dense<0.000000e+00> : vector<8x256xf32>
    %11 = tpu.matmul %10, %3, %cst_8 {dimension_numbers = #tpu.dot_dimension_numbers<[1], [0], [0], [1], [0, 0, 1, 1], [], []>} : vector<8x64xf32>, vector<64x256xf32>, vector<8x256xf32> -> vector<8x256xf32>
    %12 = vector.broadcast %4 : vector<1x256xf32> to vector<8x256xf32>
    %13 = arith.addf %11, %12 : vector<8x256xf32>
    %14 = vector.extract_strided_slice %13 {offsets = [0, 0], sizes = [8, 128], strides = [1, 1]} : vector<8x256xf32> to vector<8x128xf32>
    %15 = vector.extract_strided_slice %13 {offsets = [0, 128], sizes = [8, 128], strides = [1, 1]} : vector<8x256xf32> to vector<8x128xf32>
    %16 = tpu.concatenate %14, %15 in 0 : vector<8x128xf32>, vector<8x128xf32> -> vector<16x128xf32>
    %cst_9 = arith.constant dense<0xFF800000> : vector<16xf32>
    %17 = vector.multi_reduction <maximumf>, %16, %cst_9 [1] : vector<16x128xf32> to vector<16xf32>
    %18 = vector.shape_cast %17 : vector<16xf32> to vector<16x1xf32>
    %19 = vector.broadcast %18 : vector<16x1xf32> to vector<16x128xf32>
    %20 = arith.subf %16, %19 : vector<16x128xf32>
    %21 = math.exp %20 : vector<16x128xf32>
    %cst_10 = arith.constant dense<0.000000e+00> : vector<16xf32>
    %22 = vector.multi_reduction <add>, %21, %cst_10 [1] : vector<16x128xf32> to vector<16xf32>
    %23 = vector.shape_cast %22 : vector<16xf32> to vector<16x1xf32>
    %24 = math.log %23 : vector<16x1xf32>
    %25 = vector.broadcast %24 : vector<16x1xf32> to vector<16x128xf32>
    %26 = arith.subf %20, %25 : vector<16x128xf32>
    %27 = vector.shape_cast %26 : vector<16x128xf32> to vector<2x8x128xf32>
    %c0_11 = arith.constant 0 : index
    %c0_12 = arith.constant 0 : index
    %c0_13 = arith.constant 0 : index
    %28 = vector.load %arg3[%c0_11, %c0_12, %c0_13] : memref<2x8x128xf32, #tpu.memory_space<vmem>>, vector<2x8x128xf32>
    tpu.vector_store %arg3[%c0_11, %c0_12, %c0_13], %27 {strides = array<i32>} : memref<2x8x128xf32, #tpu.memory_space<vmem>>, vector<2x8x128xf32>,
    return
  }
}

</mosaic_0001>

<llo_original>
// kernel: tpu_custom_call.1
$region0: #{tpu_custom_call.1}
  #allocation0 [shape = 'u32[]', space=smem, size = 0x4, offset = 0x4, fixed_abs, tag = 'smem constant byte address 0x4 - core index']
  #allocation1 [shape = 'u32[144,128]{1,0:T(1,128)}', space=vmem, size = 0x12000, scoped, tag = 'internal scratch']
  %s0 = inlined_call_operand.hbm [shape: f32[8,32], index: 0, kind: input, shape index: {}]
  %s1 = inlined_call_operand.hbm [shape: f32[40,64], index: 1, kind: input, shape index: {}]
  %s2 = inlined_call_operand.hbm [shape: f32[72,256], index: 2, kind: input, shape index: {}]
  %s3 = inlined_call_operand.hbm [shape: f32[2,8,128], index: 3, kind: output, shape index: {}]
  %s4 = sld [smem:[#allocation0]]
  $region34: #{tpu_custom_call.1} parent=0
    _
  %s6 = ssub.s32 1, %s4
  %s7 = scalar_select 0, %s6, %s4
  $region1: #{tpu_custom_call.1} parent=0
    #allocation2 [shape = 'u8[4096]{0}', space=vmem, size = 0x1000, scoped, tag = 'input window, operand 0, single buffered']
    #allocation3 [shape = 's32[1]{0}', space=sflag, size = 0x4, scoped, tag = 'scoped memory for tpu_custom_call.1']
    #allocation4 [shape = 's32[1]{0}', space=sflag, size = 0x4, scoped, tag = 'scoped memory for tpu_custom_call.1']
    #allocation5 [shape = 'u8[20480]{0}', space=vmem, size = 0x5000, scoped, tag = 'input window, operand 1, single buffered']
    #allocation6 [shape = 's32[1]{0}', space=sflag, size = 0x4, scoped, tag = 'scoped memory for tpu_custom_call.1']
    #allocation7 [shape = 'u8[73728]{0}', space=vmem, size = 0x12000, scoped, tag = 'input window, operand 2, single buffered']
    #allocation8 [shape = 'u8[8192]{0}', space=vmem, size = 0x2000, scoped, tag = 'output window, operand 0, single buffered']
    %8 = vsyncpa [#allocation3], 0
    %9 = vsyncpa [#allocation6], 0
    %10 = vsyncpa [#allocation4], 0
    // Predicated region
    $region2: #{tpu_custom_call.1} parent=1 // pred_check
      _
    $region3: #{tpu_custom_call.1} parent=1 // pred_check_branch
      %12 = sbr.rel (0) target = $region5
    $region4: #{tpu_custom_call.1} parent=1 // pred_region
      %s14 = ssub.s32 128, 128
      %15 = vsyncadd [#allocation3], %s14
      %s17 = sshll.u32 [#allocation2], 4
      %s18 = int_to_ptr.vmem [resolvable:$true] %s17
      %20 = dma.hbm_to_vmem [thread:$0]  %s0, 128, %s18, [#allocation3]
    $region5: #{tpu_custom_call.1} parent=1 // pred_fallthru
      _
    // Predicated region
    $region6: #{tpu_custom_call.1} parent=1 // pred_check
      _
    $region7: #{tpu_custom_call.1} parent=1 // pred_check_branch
      %22 = sbr.rel (0) target = $region9
    $region8: #{tpu_custom_call.1} parent=1 // pred_region
      %s24 = ssub.s32 640, 640
      %25 = vsyncadd [#allocation6], %s24
      %s26 = sshll.u32 [#allocation5], 4
      %s27 = int_to_ptr.vmem [resolvable:$true] %s26
      %32 = dma.hbm_to_vmem [thread:$0]  %s1, 640, %s27, [#allocation6], 128, 128, 8
    $region9: #{tpu_custom_call.1} parent=1 // pred_fallthru
      _
    // Predicated region
    $region10: #{tpu_custom_call.1} parent=1 // pred_check
      _
    $region11: #{tpu_custom_call.1} parent=1 // pred_check_branch
      %34 = sbr.rel (0) target = $region13
    $region12: #{tpu_custom_call.1} parent=1 // pred_region
      %s36 = ssub.s32 2304, 2304
      %37 = vsyncadd [#allocation6], %s36
      %s38 = sshll.u32 [#allocation7], 4
      %s39 = int_to_ptr.vmem [resolvable:$true] %s38
      %44 = dma.hbm_to_vmem [thread:$0]  %s2, 2304, %s39, [#allocation6], 256, 256, 16
    $region13: #{tpu_custom_call.1} parent=1 // pred_fallthru
      _
    // Predicated region
    $region14: #{tpu_custom_call.1} parent=1 // pred_check
      _
    $region15: #{tpu_custom_call.1} parent=1 // pred_check_branch
      %46 = sbr.rel (0) target = $region17
    $region16: #{tpu_custom_call.1} parent=1 // pred_region
      %47 = dma.done [#allocation3], 128
    $region17: #{tpu_custom_call.1} parent=1 // pred_fallthru
      _
    // Predicated region
    $region18: #{tpu_custom_call.1} parent=1 // pred_check
      _
    $region19: #{tpu_custom_call.1} parent=1 // pred_check_branch
      %49 = sbr.rel (0) target = $region21
    $region20: #{tpu_custom_call.1} parent=1 // pred_region
      %50 = dma.done [#allocation6], 640
    $region21: #{tpu_custom_call.1} parent=1 // pred_fallthru
      _
    // Predicated region
    $region22: #{tpu_custom_call.1} parent=1 // pred_check
      _
    $region23: #{tpu_custom_call.1} parent=1 // pred_check_branch
      %52 = sbr.rel (0) target = $region25
    $region24: #{tpu_custom_call.1} parent=1 // pred_region
      %53 = dma.done [#allocation6], 2304
    $region25: #{tpu_custom_call.1} parent=1 // pred_fallthru
      _
    %v54 = vld [vmem:[#allocation2] sm:$0xff]
    %v55 = vld [vmem:[#allocation5] sm:$0xff]
    %v56 = vld [vmem:[#allocation5 + $0x8] sm:$0xff]
    %v57 = vld [vmem:[#allocation5 + $0x10] sm:$0xff]
    %v58 = vld [vmem:[#allocation5 + $0x18] sm:$0xff]
    %v59 = vld [vmem:[#allocation5 + $0x20] sm:$0x1]
    %v60 = vld [vmem:[#allocation7] sm:$0xff]
    %v61 = vld [vmem:[#allocation7 + $0x8] sm:$0xff]
    %v62 = vld [vmem:[#allocation7 + $0x10] sm:$0xff]
    %v63 = vld [vmem:[#allocation7 + $0x18] sm:$0xff]
    %v64 = vld [vmem:[#allocation7 + $0x20] sm:$0xff]
    %v65 = vld [vmem:[#allocation7 + $0x28] sm:$0xff]
    %v66 = vld [vmem:[#allocation7 + $0x30] sm:$0xff]
    %v67 = vld [vmem:[#allocation7 + $0x38] sm:$0xff]
    %v68 = vld [vmem:[#allocation7 + $0x40] sm:$0xff]
    %v69 = vld [vmem:[#allocation7 + $0x48] sm:$0xff]
    %v70 = vld [vmem:[#allocation7 + $0x50] sm:$0xff]
    %v71 = vld [vmem:[#allocation7 + $0x58] sm:$0xff]
    %v72 = vld [vmem:[#allocation7 + $0x60] sm:$0xff]
    %v73 = vld [vmem:[#allocation7 + $0x68] sm:$0xff]
    %v74 = vld [vmem:[#allocation7 + $0x70] sm:$0xff]
    %v75 = vld [vmem:[#allocation7 + $0x78] sm:$0xff]
    %s76 = scalar_lea.vmem [#allocation7], 128
    %v77 = vld [vmem:[%s76] ss:$8 sm:$0x3]
    %v78 = vlaneseq
    %v79 = vshrl.u32 %v78, 7
    %v80 = vsub.s32 0, %v79
    %v81 = vrot.slane %v59, %v80
    %vm82 = vcmask 261120
    %v84 = vsel %vm82, %v54, 0
    %86 = vmatprep.subr.mxu0 0.0
    %87 = vmatpush1.msra.mxu0 %v55
    %88 = vmatprep.subr.mxu0 0.0
    %89 = vmatpush1.msra.mxu0 %v56
    %90 = vmatprep.subr.mxu0 0.0
    %91 = vmatpush1.msra.mxu0 %v57
    %92 = vmatprep.subr.mxu0 0.0
    %93 = vmatpush1.msra.mxu0 %v58
    %94 = vmatprep.subr.mxu0 0.0
    %95 = vmatpush1.msra.mxu0 0.0
    %96 = vmatprep.subr.mxu0 0.0
    %97 = vmatpush1.msra.mxu0 0.0
    %98 = vmatprep.subr.mxu0 0.0
    %99 = vmatpush1.msra.mxu0 0.0
    %100 = vmatprep.subr.mxu0 0.0
    %101 = vmatpush1.msra.mxu0 0.0
    %102 = vmatprep.subr.mxu0 0.0
    %103 = vmatpush1.msra.mxu0 0.0
    %104 = vmatprep.subr.mxu0 0.0
    %105 = vmatpush1.msra.mxu0 0.0
    %106 = vmatprep.subr.mxu0 0.0
    %107 = vmatpush1.msra.mxu0 0.0
    %108 = vmatprep.subr.mxu0 0.0
    %109 = vmatpush1.msra.mxu0 0.0
    %110 = vmatprep.subr.mxu0 0.0
    %111 = vmatpush1.msra.mxu0 0.0
    %112 = vmatprep.subr.mxu0 0.0
    %113 = vmatpush1.msra.mxu0 0.0
    %114 = vmatprep.subr.mxu0 0.0
    %115 = vmatpush1.msra.mxu0 0.0
    %116 = vmatprep.subr.mxu0 0.0
    %117 = vmatpush1.msra.mxu0 0.0
    %118 = vmatprep.subr.mxu0 0.0
    %119 = vmatpush1.msra.mxu0 0.0
    %120 = vmatprep.subr.mxu0 0.0
    %121 = vmatpush1.msra.mxu0 0.0
    %122 = vmatprep.subr.mxu0 0.0
    %123 = vmatpush1.msra.mxu0 0.0
    %124 = vmatprep.subr.mxu0 0.0
    %125 = vmatpush1.msra.mxu0 0.0
    %126 = vmatprep.subr.mxu0 0.0
    %127 = vmatpush1.msra.mxu0 0.0
    %128 = vmatprep.subr.mxu0 0.0
    %129 = vmatpush1.msra.mxu0 0.0
    %130 = vmatprep.subr.mxu0 0.0
    %131 = vmatpush1.msra.mxu0 0.0
    %132 = vmatprep.subr.mxu0 0.0
    %133 = vmatpush1.msra.mxu0 0.0
    %134 = vmatprep.subr.mxu0 0.0
    %135 = vmatpush1.msra.mxu0 0.0
    %136 = vmatprep.subr.mxu0 0.0
    %137 = vmatpush1.msra.mxu0 0.0
    %138 = vmatprep.subr.mxu0 0.0
    %139 = vmatpush1.msra.mxu0 0.0
    %140 = vmatprep.subr.mxu0 0.0
    %141 = vmatpush1.msra.mxu0 0.0
    %142 = vmatprep.subr.mxu0 0.0
    %143 = vmatpush1.msra.mxu0 0.0
    %144 = vmatprep.subr.mxu0 0.0
    %145 = vmatpush1.msra.mxu0 0.0
    %146 = vmatprep.subr.mxu0 0.0
    %147 = vmatpush1.msra.mxu0 0.0
    %148 = vmatprep.subr.mxu0 0.0
    %149 = vmatpush1.msra.mxu0 0.0
    %150 = vmatprep.mubr.f32.mxu0 0.0
    %151 = vmatmul.mubr.f32.gmra.mrb[0].mxu0 %v84
    %v152 = vpop.f32.mrb[0].mxu0
    %v153 = vadd.f32 %v81, %v152
    %v154 = vpop.f32.mrb[0].mxu0
    %155 = vdwg.mxu0
    %v156 = vmul.f32 %v153, 0.1
    %v157 = vmax.f32 %v153, %v156
    %v159 = vlaneseq
    %v160 = vshrl.u32 %v159, 7
    %v161 = vsub.s32 0, %v160
    %v162 = vrot.slane %v77, %v161
    %v163 = vlaneseq
    %v164 = vshrl.u32 %v163, 7
    %v165 = vsub.s32 1, %v164
    %v166 = vrot.slane %v77, %v165
    %vm169 = vcmask 523264
    %v171 = vsel %vm169, %v157, 0
    %173 = vmatprep.subr.mxu0 %v61
    %174 = vmatpush1.msra.mxu0 %v60
    %175 = vmatprep.subr.mxu0 %v63
    %176 = vmatpush1.msra.mxu0 %v62
    %177 = vmatprep.subr.mxu0 %v65
    %178 = vmatpush1.msra.mxu0 %v64
    %179 = vmatprep.subr.mxu0 %v67
    %180 = vmatpush1.msra.mxu0 %v66
    %181 = vmatprep.subr.mxu0 %v69
    %182 = vmatpush1.msra.mxu0 %v68
    %183 = vmatprep.subr.mxu0 %v71
    %184 = vmatpush1.msra.mxu0 %v70
    %185 = vmatprep.subr.mxu0 %v73
    %186 = vmatpush1.msra.mxu0 %v72
    %187 = vmatprep.subr.mxu0 %v75
    %188 = vmatpush1.msra.mxu0 %v74
    %189 = vmatprep.subr.mxu0 0.0
    %190 = vmatpush1.msra.mxu0 0.0
    %191 = vmatprep.subr.mxu0 0.0
    %192 = vmatpush1.msra.mxu0 0.0
    %193 = vmatprep.subr.mxu0 0.0
    %194 = vmatpush1.msra.mxu0 0.0
    %195 = vmatprep.subr.mxu0 0.0
    %196 = vmatpush1.msra.mxu0 0.0
    %197 = vmatprep.subr.mxu0 0.0
    %198 = vmatpush1.msra.mxu0 0.0
    %199 = vmatprep.subr.mxu0 0.0
    %200 = vmatpush1.msra.mxu0 0.0
    %201 = vmatprep.subr.mxu0 0.0
    %202 = vmatpush1.msra.mxu0 0.0
    %203 = vmatprep.subr.mxu0 0.0
    %204 = vmatpush1.msra.mxu0 0.0
    %205 = vmatprep.subr.mxu0 0.0
    %206 = vmatpush1.msra.mxu0 0.0
    %207 = vmatprep.subr.mxu0 0.0
    %208 = vmatpush1.msra.mxu0 0.0
    %209 = vmatprep.subr.mxu0 0.0
    %210 = vmatpush1.msra.mxu0 0.0
    %211 = vmatprep.subr.mxu0 0.0
    %212 = vmatpush1.msra.mxu0 0.0
    %213 = vmatprep.subr.mxu0 0.0
    %214 = vmatpush1.msra.mxu0 0.0
    %215 = vmatprep.subr.mxu0 0.0
    %216 = vmatpush1.msra.mxu0 0.0
    %217 = vmatprep.subr.mxu0 0.0
    %218 = vmatpush1.msra.mxu0 0.0
    %219 = vmatprep.subr.mxu0 0.0
    %220 = vmatpush1.msra.mxu0 0.0
    %221 = vmatprep.subr.mxu0 0.0
    %222 = vmatpush1.msra.mxu0 0.0
    %223 = vmatprep.subr.mxu0 0.0
    %224 = vmatpush1.msra.mxu0 0.0
    %225 = vmatprep.subr.mxu0 0.0
    %226 = vmatpush1.msra.mxu0 0.0
    %227 = vmatprep.subr.mxu0 0.0
    %228 = vmatpush1.msra.mxu0 0.0
    %229 = vmatprep.subr.mxu0 0.0
    %230 = vmatpush1.msra.mxu0 0.0
    %231 = vmatprep.subr.mxu0 0.0
    %232 = vmatpush1.msra.mxu0 0.0
    %233 = vmatprep.subr.mxu0 0.0
    %234 = vmatpush1.msra.mxu0 0.0
    %235 = vmatprep.subr.mxu0 0.0
    %236 = vmatpush1.msra.mxu0 0.0
    %237 = vmatprep.mubr.f32.mxu0 0.0
    %238 = vmatmul.mubr.f32.gmra.mrb[0].mxu0 %v171
    %v239 = vpop.f32.mrb[0].mxu0
    %v240 = vadd.f32 %v162, %v239
    %v241 = vpop.f32.mrb[0].mxu0
    %v242 = vadd.f32 %v166, %v241
    %243 = vdwg.mxu0
    %244 = vmax.xlane.f32.xlu0 %v240
    %v245 = vpop.xlane.xlu0 %244
    %246 = vmax.xlane.f32.xlu0 %v242
    %v247 = vpop.xlane.xlu0 %246
    %v248 = vsub.f32 %v240, %v245
    %v249 = vsub.f32 %v242, %v247
    %v250 = vmul.f32 %v248, 1.442695
    %v251 = vpow.pop %v250
    %v252 = vmul.f32 %v249, 1.442695
    %v253 = vpow.pop %v252
    %254 = vadd.xlane.f32.xlu0 %v251
    %v255 = vpop.xlane.xlu0 %254
    %256 = vadd.xlane.f32.xlu0 %v253
    %v257 = vpop.xlane.xlu0 %256
    %v258 = vlog2.pop %v255
    %v259 = vmul.f32 %v258, 0.6931472
    %v260 = vlog2.pop %v257
    %v261 = vmul.f32 %v260, 0.6931472
    %v262 = vsub.f32 %v248, %v259
    %v263 = vsub.f32 %v249, %v261
    %264 = vst [vmem:[#allocation8] sm:$0xff] %v262
    %265 = vst [vmem:[#allocation8 + $0x8] sm:$0xff] %v263
    // Predicated region
    $region26: #{tpu_custom_call.1} parent=1 // pred_check
      _
    $region27: #{tpu_custom_call.1} parent=1 // pred_check_branch
      %267 = sbr.rel (0) target = $region29
    $region28: #{tpu_custom_call.1} parent=1 // pred_region
      %s269 = ssub.s32 256, 256
      %270 = vsyncadd [#allocation4], %s269
      %s271 = sshll.u32 [#allocation8], 4
      %s272 = int_to_ptr.vmem [resolvable:$true] %s271
      %277 = dma.vmem_to_hbm [thread:$0]  %s272, 256, %s3, [#allocation4], 128, 128, 8
    $region29: #{tpu_custom_call.1} parent=1 // pred_fallthru
      _
    // Predicated region
    $region30: #{tpu_custom_call.1} parent=1 // pred_check
      _
    $region31: #{tpu_custom_call.1} parent=1 // pred_check_branch
      %279 = sbr.rel (0) target = $region33
    $region32: #{tpu_custom_call.1} parent=1 // pred_region
      %280 = dma.done [#allocation4], 256
    $region33: #{tpu_custom_call.1} parent=1 // pred_fallthru
      _
    %281 = vsyncpa [#allocation3], 1
    %282 = vsyncpa [#allocation6], 1
    %283 = vsyncpa [#allocation4], 1

</llo_original>
